<compile_context>
chip_gen: v7x
topology: tpu7x:2x2x1
jax: 0.10.0
libtpu: 0.0.40
codegen_flags: <defaults>
</compile_context>

<pallas_src>
import functools

import jax
import jax.numpy as jnp
from jax.experimental import pallas as pl
from jax.experimental.pallas import tpu as pltpu

LANE = 128
SUBLANE = 8


def _round_up(x, m):
    return ((x + m - 1) // m) * m


def _fused_ae_kernel(x_ref, *refs, n_enc, n_layers, feat_pad, pack_out,
                     packed_params, use_bf16):
    """Whole autoencoder for one M-tile: chained (matmul + bias [+ ReLU])."""
    if packed_params:
        wcat_ref, bcat_ref = refs[0], refs[1]
        out_refs = refs[2:]
    else:
        param_refs = refs[: 2 * n_layers]
        out_refs = refs[2 * n_layers:]

    h = x_ref[...].astype(jnp.float32)
    enc_h = None
    for li in range(n_layers):
        if packed_params:
            # Static, 128-lane-aligned views into the concatenated params.
            w = wcat_ref[:, li * feat_pad:(li + 1) * feat_pad]
            b = bcat_ref[li:li + 1, :]
        else:
            w = param_refs[2 * li][...]
            b = param_refs[2 * li + 1][...]

        if use_bf16:
            # bf16 operands at the MXU input, f32 accumulation; bias/ReLU stay
            # in f32 on the VPU (required on v5e, harmless elsewhere).
            acc = jnp.dot(h.astype(jnp.bfloat16), w.astype(jnp.bfloat16),
                          preferred_element_type=jnp.float32)
        else:
            acc = jnp.dot(h, w.astype(jnp.float32),
                          preferred_element_type=jnp.float32)
        h = acc + b.astype(jnp.float32)

        last_enc = li == n_enc - 1
        last_dec = li == n_layers - 1
        if not (last_enc or last_dec):
            h = jnp.maximum(h, 0.0)            # ReLU in f32 on the VPU
        if last_enc:
            enc_h = h

    if pack_out:
        # enc occupies lanes [0, enc_dim) (its padded lanes are exact zeros);
        # the last decoder layer's weight/bias were padded with enc_dim leading
        # zero columns, so `h` already holds rec in lanes
        # [enc_dim, enc_dim+rec_dim) and zeros elsewhere.  One add, one
        # lane-dense 128-wide store.
        out_refs[0][...] = (enc_h + h).astype(out_refs[0].dtype)
    else:
        out_refs[0][...] = enc_h.astype(out_refs[0].dtype)
        out_refs[1][...] = h.astype(out_refs[1].dtype)


def deep_autoencoder_forward(x, enc_params, dec_params, *, max_tile_m=1024,
                             use_bf16_matmul=False):
    """Matches DeepAutoencoder.forward: returns (encoded, reconstructed)."""
    all_params = list(enc_params) + list(dec_params)
    n_enc = len(enc_params)
    n_layers = len(all_params)

    M, d_in = x.shape
    dims = [d_in] + [w.shape[1] for (w, _) in all_params]
    pdims = [_round_up(d, LANE) for d in dims]      # lane-padded feature dims
    enc_real, rec_real = dims[n_enc], dims[-1]

    # --- Batch tiling --------------------------------------------------------
    # Adaptive tile_m bounds batch-padding waste to <8 rows per tile; when the
    # batch is big enough we also force >= 2 tiles so v7x's two TensorCores can
    # both take grid steps (one extra ~0.35us step is negligible on v5e/v6e).
    n_tiles = pl.cdiv(M, max_tile_m)
    if M >= 2 * SUBLANE:
        n_tiles = max(n_tiles, 2)
    tile_m = _round_up(pl.cdiv(M, n_tiles), SUBLANE)
    Mp = n_tiles * tile_m
    grid_m = n_tiles

    xp = jnp.pad(x, ((0, Mp - M), (0, pdims[0] - d_in)))

    # --- Output packing ------------------------------------------------------
    # If enc and rec fit side by side inside one 128-lane row, emit a single
    # lane-dense (tile_m, 128) output slab instead of two 128-padded outputs.
    pack_out = (pdims[n_enc] == LANE and pdims[-1] == LANE
                and enc_real + rec_real <= LANE)

    # --- Parameter padding / packing -----------------------------------------
    w_dtype = jnp.bfloat16 if use_bf16_matmul else jnp.float32
    packed_params = all(p == pdims[0] for p in pdims)
    feat_pad = pdims[0]

    def pad_layer(li):
        w, b = all_params[li]
        kp, np_ = pdims[li], pdims[li + 1]
        # Last decoder layer: shift its real columns to lane offset enc_real so
        # the packed enc|rec slab is built with a single add in the kernel.
        col_off = enc_real if (pack_out and li == n_layers - 1) else 0
        wp = jnp.pad(w, ((0, kp - w.shape[0]),
                         (col_off, np_ - w.shape[1] - col_off)))
        bp = jnp.pad(b, (col_off, np_ - b.shape[0] - col_off))
        return wp.astype(w_dtype), bp.astype(jnp.float32)

    if packed_params:
        padded = [pad_layer(li) for li in range(n_layers)]
        wcat = jnp.concatenate([wp for wp, _ in padded], axis=1)  # (P, L*P)
        bcat = jnp.stack([bp for _, bp in padded], axis=0)        # (L, P)
        param_arrays = [wcat, bcat]
        param_specs = [
            pl.BlockSpec((feat_pad, n_layers * feat_pad), lambda i: (0, 0)),
            pl.BlockSpec((n_layers, feat_pad), lambda i: (0, 0)),
        ]
    else:
        param_arrays, param_specs = [], []
        for li in range(n_layers):
            wp, bp = pad_layer(li)
            kp, np_ = pdims[li], pdims[li + 1]
            param_arrays += [wp, bp.reshape(1, np_)]
            param_specs += [pl.BlockSpec((kp, np_), lambda i: (0, 0)),
                            pl.BlockSpec((1, np_), lambda i: (0, 0))]

    # --- Output shapes / specs -----------------------------------------------
    if pack_out:
        out_shape = jax.ShapeDtypeStruct((Mp, LANE), x.dtype)
        out_specs = pl.BlockSpec((tile_m, LANE), lambda i: (i, 0))
    else:
        out_shape = (jax.ShapeDtypeStruct((Mp, pdims[n_enc]), x.dtype),
                     jax.ShapeDtypeStruct((Mp, pdims[-1]), x.dtype))
        out_specs = (pl.BlockSpec((tile_m, pdims[n_enc]), lambda i: (i, 0)),
                     pl.BlockSpec((tile_m, pdims[-1]), lambda i: (i, 0)))

    # --- Cost estimate on REAL (unpadded) dims --------------------------------
    flops = 2 * M * sum(dims[i] * dims[i + 1] for i in range(n_layers))
    bytes_accessed = 4 * (M * d_in + M * (enc_real + rec_real)) + sum(
        int(w.size) * (2 if use_bf16_matmul else 4) + int(b.size) * 4
        for (w, b) in all_params)

    # --- VMEM guard (v7x: 64 MiB physical, 32 MiB default scoped) -------------
    param_bytes = sum(int(a.size) * a.dtype.itemsize for a in param_arrays)
    out_cols = LANE if pack_out else (pdims[n_enc] + pdims[-1])
    tile_bytes = 4 * tile_m * (pdims[0] + out_cols)
    vmem_estimate = 2 * (param_bytes + tile_bytes)        # double-buffered
    cp_kwargs = dict(dimension_semantics=("parallel",))
    if vmem_estimate > 28 * 1024 * 1024:
        # TODO(synk): re-derive tile_m against v7x's 64 MiB physical VMEM if
        # this kernel is reused with much wider hidden dims.
        cp_kwargs["vmem_limit_bytes"] = min(int(1.5 * vmem_estimate),
                                            56 * 1024 * 1024)

    outs = pl.pallas_call(
        functools.partial(_fused_ae_kernel, n_enc=n_enc, n_layers=n_layers,
                          feat_pad=feat_pad, pack_out=pack_out,
                          packed_params=packed_params,
                          use_bf16=use_bf16_matmul),
        out_shape=out_shape,
        grid=(grid_m,),
        in_specs=[pl.BlockSpec((tile_m, pdims[0]), lambda i: (i, 0))]
        + param_specs,
        out_specs=out_specs,
        compiler_params=pltpu.CompilerParams(**cp_kwargs),
        cost_estimate=pl.CostEstimate(flops=int(flops), transcendentals=0,
                                      bytes_accessed=int(bytes_accessed)),
    )(xp, *param_arrays)

    # Strip lane/batch padding and split enc / rec.
    if pack_out:
        enc = outs[:M, :enc_real]
        rec = outs[:M, enc_real:enc_real + rec_real]
    else:
        enc = outs[0][:M, :enc_real]
        rec = outs[1][:M, :rec_real]
    return enc, rec


def init_params(key, input_dim, output_dim, hidden_dim):
    """Deterministic parameter init mirroring the PyTorch module's layer shapes."""
    enc_dims = [input_dim, hidden_dim[0], hidden_dim[1], hidden_dim[2], output_dim]
    dec_dims = [output_dim, hidden_dim[2], hidden_dim[1], hidden_dim[0], input_dim]

    def make_stack(key, dims):
        layers = []
        for i in range(len(dims) - 1):
            key, kw, kb = jax.random.split(key, 3)
            scale = 1.0 / jnp.sqrt(dims[i])
            w = jax.random.uniform(
                kw, (dims[i], dims[i + 1]), jnp.float32, -scale, scale
            )
            b = jax.random.uniform(kb, (dims[i + 1],), jnp.float32, -scale, scale)
            layers.append((w, b))
        return key, layers

    key, enc = make_stack(key, enc_dims)
    key, dec = make_stack(key, dec_dims)
    return enc, dec


def _ref_forward(x, enc, dec):
    h = x
    for li, (w, b) in enumerate(enc):
        h = h @ w + b
        if li < len(enc) - 1:
            h = jnp.maximum(h, 0.0)
    e = h
    for li, (w, b) in enumerate(dec):
        h = h @ w + b
        if li < len(dec) - 1:
            h = jnp.maximum(h, 0.0)
    return e, h


if __name__ == "__main__":
    key = jax.random.PRNGKey(0)

    # Small shapes consistent with the module's forward (2D inputs to Linear).
    batch = 8
    input_dim = 64
    hidden_dim = [48, 32, 24]
    output_dim = 16

    key, kx = jax.random.split(key)
    x = jax.random.normal(kx, (batch, input_dim), dtype=jnp.float32)

    enc_params, dec_params = init_params(key, input_dim, output_dim, hidden_dim)

    fwd = jax.jit(deep_autoencoder_forward)
    e, recon = fwd(x, enc_params, dec_params)
    jax.block_until_ready((e, recon))

    assert e.shape == (batch, output_dim) and e.dtype == jnp.float32
    assert recon.shape == (batch, input_dim) and recon.dtype == jnp.float32

    e_ref, r_ref = _ref_forward(x, enc_params, dec_params)
    assert jnp.allclose(e, e_ref, atol=1e-5, rtol=1e-5)
    assert jnp.allclose(recon, r_ref, atol=1e-5, rtol=1e-5)

    # Second check at an awkward batch size: exercises the multi-tile grid
    # (grid_m >= 2, megacore-friendly) and the padded last tile.
    key, kx2 = jax.random.split(key)
    x2 = jax.random.normal(kx2, (300, input_dim), dtype=jnp.float32)
    e2, recon2 = fwd(x2, enc_params, dec_params)
    jax.block_until_ready((e2, recon2))
    e2_ref, r2_ref = _ref_forward(x2, enc_params, dec_params)
    assert jnp.allclose(e2, e2_ref, atol=1e-5, rtol=1e-5)
    assert jnp.allclose(recon2, r2_ref, atol=1e-5, rtol=1e-5)

    print("KERNEL_OK")
</pallas_src>

<mosaic_0001>
module attributes {stable_mosaic.version = 11 : i64} {
  func.func @_fused_ae_kernel(%arg0: i32, %arg1: memref<8x128xf32, #tpu.memory_space<vmem>>, %arg2: memref<128x1024xf32, #tpu.memory_space<vmem>>, %arg3: memref<8x128xf32, #tpu.memory_space<vmem>>, %arg4: memref<8x128xf32, #tpu.memory_space<vmem>>) attributes {dimension_semantics = [#tpu.dimension_semantics<parallel>], iteration_bounds = array<i64: 1>, scalar_prefetch = 0 : i64, scratch_operands = 0 : i64, tpu.core_type = #tpu.core_type<tc>, window_params = [{transform_indices = @transform_0, window_bounds = array<i64: 8, 128>}, {pipeline_mode = #tpu.pipeline_mode<synchronous>, transform_indices = @transform_1, window_bounds = array<i64: 128, 1024>}, {pipeline_mode = #tpu.pipeline_mode<synchronous>, transform_indices = @transform_2, window_bounds = array<i64: 8, 128>}, {transform_indices = @transform_3, window_bounds = array<i64: 8, 128>}]} {
    %c0 = arith.constant 0 : index
    %c0_0 = arith.constant 0 : index
    %0 = vector.load %arg1[%c0, %c0_0] : memref<8x128xf32, #tpu.memory_space<vmem>>, vector<8x128xf32>
    %c0_1 = arith.constant 0 : index
    %c0_2 = arith.constant 0 : index
    %1 = vector.load %arg2[%c0_1, %c0_2] : memref<128x1024xf32, #tpu.memory_space<vmem>>, vector<128x128xf32>
    %c0_3 = arith.constant 0 : index
    %c0_4 = arith.constant 0 : index
    %2 = vector.load %arg3[%c0_3, %c0_4] : memref<8x128xf32, #tpu.memory_space<vmem>>, vector<1x128xf32>
    %cst = arith.constant dense<0.000000e+00> : vector<8x128xf32>
    %3 = tpu.matmul %0, %1, %cst {dimension_numbers = #tpu.dot_dimension_numbers<[1], [0], [0], [1], [0, 0, 1, 1], [], []>} : vector<8x128xf32>, vector<128x128xf32>, vector<8x128xf32> -> vector<8x128xf32>
    %4 = vector.broadcast %2 : vector<1x128xf32> to vector<8x128xf32>
    %5 = arith.addf %3, %4 : vector<8x128xf32>
    %cst_5 = arith.constant 0.000000e+00 : f32
    %6 = vector.broadcast %cst_5 : f32 to vector<8x128xf32>
    %7 = arith.maximumf %5, %6 : vector<8x128xf32>
    %c0_6 = arith.constant 0 : index
    %c128 = arith.constant 128 : index
    %8 = vector.load %arg2[%c0_6, %c128] : memref<128x1024xf32, #tpu.memory_space<vmem>>, vector<128x128xf32>
    %c1 = arith.constant 1 : index
    %c0_7 = arith.constant 0 : index
    %9 = vector.load %arg3[%c1, %c0_7] : memref<8x128xf32, #tpu.memory_space<vmem>>, vector<1x128xf32>
    %cst_8 = arith.constant dense<0.000000e+00> : vector<8x128xf32>
    %10 = tpu.matmul %7, %8, %cst_8 {dimension_numbers = #tpu.dot_dimension_numbers<[1], [0], [0], [1], [0, 0, 1, 1], [], []>} : vector<8x128xf32>, vector<128x128xf32>, vector<8x128xf32> -> vector<8x128xf32>
    %11 = vector.broadcast %9 : vector<1x128xf32> to vector<8x128xf32>
    %12 = arith.addf %10, %11 : vector<8x128xf32>
    %cst_9 = arith.constant 0.000000e+00 : f32
    %13 = vector.broadcast %cst_9 : f32 to vector<8x128xf32>
    %14 = arith.maximumf %12, %13 : vector<8x128xf32>
    %c0_10 = arith.constant 0 : index
    %c256 = arith.constant 256 : index
    %15 = vector.load %arg2[%c0_10, %c256] : memref<128x1024xf32, #tpu.memory_space<vmem>>, vector<128x128xf32>
    %c2 = arith.constant 2 : index
    %c0_11 = arith.constant 0 : index
    %16 = vector.load %arg3[%c2, %c0_11] : memref<8x128xf32, #tpu.memory_space<vmem>>, vector<1x128xf32>
    %cst_12 = arith.constant dense<0.000000e+00> : vector<8x128xf32>
    %17 = tpu.matmul %14, %15, %cst_12 {dimension_numbers = #tpu.dot_dimension_numbers<[1], [0], [0], [1], [0, 0, 1, 1], [], []>} : vector<8x128xf32>, vector<128x128xf32>, vector<8x128xf32> -> vector<8x128xf32>
    %18 = vector.broadcast %16 : vector<1x128xf32> to vector<8x128xf32>
    %19 = arith.addf %17, %18 : vector<8x128xf32>
    %cst_13 = arith.constant 0.000000e+00 : f32
    %20 = vector.broadcast %cst_13 : f32 to vector<8x128xf32>
    %21 = arith.maximumf %19, %20 : vector<8x128xf32>
    %c0_14 = arith.constant 0 : index
    %c384 = arith.constant 384 : index
    %22 = vector.load %arg2[%c0_14, %c384] : memref<128x1024xf32, #tpu.memory_space<vmem>>, vector<128x128xf32>
    %c3 = arith.constant 3 : index
    %c0_15 = arith.constant 0 : index
    %23 = vector.load %arg3[%c3, %c0_15] : memref<8x128xf32, #tpu.memory_space<vmem>>, vector<1x128xf32>
    %cst_16 = arith.constant dense<0.000000e+00> : vector<8x128xf32>
    %24 = tpu.matmul %21, %22, %cst_16 {dimension_numbers = #tpu.dot_dimension_numbers<[1], [0], [0], [1], [0, 0, 1, 1], [], []>} : vector<8x128xf32>, vector<128x128xf32>, vector<8x128xf32> -> vector<8x128xf32>
    %25 = vector.broadcast %23 : vector<1x128xf32> to vector<8x128xf32>
    %26 = arith.addf %24, %25 : vector<8x128xf32>
    %c0_17 = arith.constant 0 : index
    %c512 = arith.constant 512 : index
    %27 = vector.load %arg2[%c0_17, %c512] : memref<128x1024xf32, #tpu.memory_space<vmem>>, vector<128x128xf32>
    %c4 = arith.constant 4 : index
    %c0_18 = arith.constant 0 : index
    %28 = vector.load %arg3[%c4, %c0_18] : memref<8x128xf32, #tpu.memory_space<vmem>>, vector<1x128xf32>
    %cst_19 = arith.constant dense<0.000000e+00> : vector<8x128xf32>
    %29 = tpu.matmul %26, %27, %cst_19 {dimension_numbers = #tpu.dot_dimension_numbers<[1], [0], [0], [1], [0, 0, 1, 1], [], []>} : vector<8x128xf32>, vector<128x128xf32>, vector<8x128xf32> -> vector<8x128xf32>
    %30 = vector.broadcast %28 : vector<1x128xf32> to vector<8x128xf32>
    %31 = arith.addf %29, %30 : vector<8x128xf32>
    %cst_20 = arith.constant 0.000000e+00 : f32
    %32 = vector.broadcast %cst_20 : f32 to vector<8x128xf32>
    %33 = arith.maximumf %31, %32 : vector<8x128xf32>
    %c0_21 = arith.constant 0 : index
    %c640 = arith.constant 640 : index
    %34 = vector.load %arg2[%c0_21, %c640] : memref<128x1024xf32, #tpu.memory_space<vmem>>, vector<128x128xf32>
    %c5 = arith.constant 5 : index
    %c0_22 = arith.constant 0 : index
    %35 = vector.load %arg3[%c5, %c0_22] : memref<8x128xf32, #tpu.memory_space<vmem>>, vector<1x128xf32>
    %cst_23 = arith.constant dense<0.000000e+00> : vector<8x128xf32>
    %36 = tpu.matmul %33, %34, %cst_23 {dimension_numbers = #tpu.dot_dimension_numbers<[1], [0], [0], [1], [0, 0, 1, 1], [], []>} : vector<8x128xf32>, vector<128x128xf32>, vector<8x128xf32> -> vector<8x128xf32>
    %37 = vector.broadcast %35 : vector<1x128xf32> to vector<8x128xf32>
    %38 = arith.addf %36, %37 : vector<8x128xf32>
    %cst_24 = arith.constant 0.000000e+00 : f32
    %39 = vector.broadcast %cst_24 : f32 to vector<8x128xf32>
    %40 = arith.maximumf %38, %39 : vector<8x128xf32>
    %c0_25 = arith.constant 0 : index
    %c768 = arith.constant 768 : index
    %41 = vector.load %arg2[%c0_25, %c768] : memref<128x1024xf32, #tpu.memory_space<vmem>>, vector<128x128xf32>
    %c6 = arith.constant 6 : index
    %c0_26 = arith.constant 0 : index
    %42 = vector.load %arg3[%c6, %c0_26] : memref<8x128xf32, #tpu.memory_space<vmem>>, vector<1x128xf32>
    %cst_27 = arith.constant dense<0.000000e+00> : vector<8x128xf32>
    %43 = tpu.matmul %40, %41, %cst_27 {dimension_numbers = #tpu.dot_dimension_numbers<[1], [0], [0], [1], [0, 0, 1, 1], [], []>} : vector<8x128xf32>, vector<128x128xf32>, vector<8x128xf32> -> vector<8x128xf32>
    %44 = vector.broadcast %42 : vector<1x128xf32> to vector<8x128xf32>
    %45 = arith.addf %43, %44 : vector<8x128xf32>
    %cst_28 = arith.constant 0.000000e+00 : f32
    %46 = vector.broadcast %cst_28 : f32 to vector<8x128xf32>
    %47 = arith.maximumf %45, %46 : vector<8x128xf32>
    %c0_29 = arith.constant 0 : index
    %c896 = arith.constant 896 : index
    %48 = vector.load %arg2[%c0_29, %c896] : memref<128x1024xf32, #tpu.memory_space<vmem>>, vector<128x128xf32>
    %c7 = arith.constant 7 : index
    %c0_30 = arith.constant 0 : index
    %49 = vector.load %arg3[%c7, %c0_30] : memref<8x128xf32, #tpu.memory_space<vmem>>, vector<1x128xf32>
    %cst_31 = arith.constant dense<0.000000e+00> : vector<8x128xf32>
    %50 = tpu.matmul %47, %48, %cst_31 {dimension_numbers = #tpu.dot_dimension_numbers<[1], [0], [0], [1], [0, 0, 1, 1], [], []>} : vector<8x128xf32>, vector<128x128xf32>, vector<8x128xf32> -> vector<8x128xf32>
    %51 = vector.broadcast %49 : vector<1x128xf32> to vector<8x128xf32>
    %52 = arith.addf %50, %51 : vector<8x128xf32>
    %53 = arith.addf %26, %52 : vector<8x128xf32>
    %c0_32 = arith.constant 0 : index
    %c0_33 = arith.constant 0 : index
    %54 = vector.load %arg4[%c0_32, %c0_33] : memref<8x128xf32, #tpu.memory_space<vmem>>, vector<8x128xf32>
    tpu.vector_store %arg4[%c0_32, %c0_33], %53 {strides = array<i32>} : memref<8x128xf32, #tpu.memory_space<vmem>>, vector<8x128xf32>,
    return
  }
  func.func @transform_0(%arg0: i32) -> (i32, i32) {
    %c0_i32 = arith.constant 0 : i32
    %c0_i32_0 = arith.constant 0 : i32
    return %arg0, %c0_i32 : i32, i32
  }
  func.func @transform_1(%arg0: i32) -> (i32, i32) {
    %c0_i32 = arith.constant 0 : i32
    %c0_i32_0 = arith.constant 0 : i32
    %c0_i32_1 = arith.constant 0 : i32
    return %c0_i32, %c0_i32_0 : i32, i32
  }
  func.func @transform_2(%arg0: i32) -> (i32, i32) {
    %c0_i32 = arith.constant 0 : i32
    %c0_i32_0 = arith.constant 0 : i32
    %c0_i32_1 = arith.constant 0 : i32
    return %c0_i32, %c0_i32_0 : i32, i32
  }
  func.func @transform_3(%arg0: i32) -> (i32, i32) {
    %c0_i32 = arith.constant 0 : i32
    %c0_i32_0 = arith.constant 0 : i32
    return %arg0, %c0_i32 : i32, i32
  }
}

</mosaic_0001>

<llo_original>
// kernel: deep_autoencoder_forward.1
$region0: #{deep_autoencoder_forward.1}
  #allocation0 [shape = 'u32[]', space=smem, size = 0x4, offset = 0x4, fixed_abs, tag = 'smem constant byte address 0x4 - core index']
  #allocation1 [shape = 'u32[144,128]{1,0:T(1,128)}', space=vmem, size = 0x12000, scoped, tag = 'internal scratch']
  %s0 = inlined_call_operand.vmem [shape: f32[8,128], index: 0, kind: input, shape index: {}]
  %s1 = inlined_call_operand.vmem [shape: f32[128,1024], index: 1, kind: input, shape index: {}]
  %s2 = inlined_call_operand.vmem [shape: f32[8,128], index: 2, kind: input, shape index: {}]
  %s3 = inlined_call_operand.vmem [shape: f32[8,128], index: 3, kind: output, shape index: {}]
  %s4 = sld [smem:[#allocation0]]
  $region22: #{deep_autoencoder_forward.1} parent=0
    _
  %s6 = ssub.s32 1, %s4
  %s7 = scalar_select 0, %s6, %s4
  // Predicated region
  $region2: #{deep_autoencoder_forward.1} parent=0 // pred_check
    _
  $region3: #{deep_autoencoder_forward.1} parent=0 // pred_check_branch
    %9 = sbr.rel (0) target = $region5
  $region4: #{deep_autoencoder_forward.1} parent=0 // pred_region
    _
  $region5: #{deep_autoencoder_forward.1} parent=0 // pred_fallthru
    _
  // Predicated region
  $region6: #{deep_autoencoder_forward.1} parent=0 // pred_check
    _
  $region7: #{deep_autoencoder_forward.1} parent=0 // pred_check_branch
    %11 = sbr.rel (0) target = $region9
  $region8: #{deep_autoencoder_forward.1} parent=0 // pred_region
    _
  $region9: #{deep_autoencoder_forward.1} parent=0 // pred_fallthru
    _
  // Predicated region
  $region10: #{deep_autoencoder_forward.1} parent=0 // pred_check
    _
  $region11: #{deep_autoencoder_forward.1} parent=0 // pred_check_branch
    %13 = sbr.rel (0) target = $region13
  $region12: #{deep_autoencoder_forward.1} parent=0 // pred_region
    _
  $region13: #{deep_autoencoder_forward.1} parent=0 // pred_fallthru
    _
  %v14 = vld [vmem:[%s0] sm:$0xff]
  %v15 = vld [vmem:[%s1] sm:$0xff]
  %v16 = vld [vmem:[%s1 + $0x40] sm:$0xff]
  %v17 = vld [vmem:[%s1 + $0x80] sm:$0xff]
  %v18 = vld [vmem:[%s1 + $0xc0] sm:$0xff]
  %v19 = vld [vmem:[%s1 + $0x100] sm:$0xff]
  %v20 = vld [vmem:[%s1 + $0x140] sm:$0xff]
  %v21 = vld [vmem:[%s1 + $0x180] sm:$0xff]
  %v22 = vld [vmem:[%s1 + $0x1c0] sm:$0xff]
  %v23 = vld [vmem:[%s1 + $0x200] sm:$0xff]
  %v24 = vld [vmem:[%s1 + $0x240] sm:$0xff]
  %v25 = vld [vmem:[%s1 + $0x280] sm:$0xff]
  %v26 = vld [vmem:[%s1 + $0x2c0] sm:$0xff]
  %v27 = vld [vmem:[%s1 + $0x300] sm:$0xff]
  %v28 = vld [vmem:[%s1 + $0x340] sm:$0xff]
  %v29 = vld [vmem:[%s1 + $0x380] sm:$0xff]
  %v30 = vld [vmem:[%s1 + $0x3c0] sm:$0xff]
  %v31 = vld [vmem:[%s2] sm:$0x1]
  %v32 = vlaneseq
  %v33 = vshrl.u32 %v32, 7
  %v34 = vsub.s32 0, %v33
  %v35 = vrot.slane %v31, %v34
  %36 = vmatprep.subr.mxu0 0.0
  %37 = vmatpush1.msra.mxu0 %v15
  %38 = vmatprep.subr.mxu0 0.0
  %39 = vmatpush1.msra.mxu0 %v16
  %40 = vmatprep.subr.mxu0 0.0
  %41 = vmatpush1.msra.mxu0 %v17
  %42 = vmatprep.subr.mxu0 0.0
  %43 = vmatpush1.msra.mxu0 %v18
  %44 = vmatprep.subr.mxu0 0.0
  %45 = vmatpush1.msra.mxu0 %v19
  %46 = vmatprep.subr.mxu0 0.0
  %47 = vmatpush1.msra.mxu0 %v20
  %48 = vmatprep.subr.mxu0 0.0
  %49 = vmatpush1.msra.mxu0 %v21
  %50 = vmatprep.subr.mxu0 0.0
  %51 = vmatpush1.msra.mxu0 %v22
  %52 = vmatprep.subr.mxu0 0.0
  %53 = vmatpush1.msra.mxu0 %v23
  %54 = vmatprep.subr.mxu0 0.0
  %55 = vmatpush1.msra.mxu0 %v24
  %56 = vmatprep.subr.mxu0 0.0
  %57 = vmatpush1.msra.mxu0 %v25
  %58 = vmatprep.subr.mxu0 0.0
  %59 = vmatpush1.msra.mxu0 %v26
  %60 = vmatprep.subr.mxu0 0.0
  %61 = vmatpush1.msra.mxu0 %v27
  %62 = vmatprep.subr.mxu0 0.0
  %63 = vmatpush1.msra.mxu0 %v28
  %64 = vmatprep.subr.mxu0 0.0
  %65 = vmatpush1.msra.mxu0 %v29
  %66 = vmatprep.subr.mxu0 0.0
  %67 = vmatpush1.msra.mxu0 %v30
  %68 = vmatprep.subr.mxu0 0.0
  %69 = vmatpush1.msra.mxu0 0.0
  %70 = vmatprep.subr.mxu0 0.0
  %71 = vmatpush1.msra.mxu0 0.0
  %72 = vmatprep.subr.mxu0 0.0
  %73 = vmatpush1.msra.mxu0 0.0
  %74 = vmatprep.subr.mxu0 0.0
  %75 = vmatpush1.msra.mxu0 0.0
  %76 = vmatprep.subr.mxu0 0.0
  %77 = vmatpush1.msra.mxu0 0.0
  %78 = vmatprep.subr.mxu0 0.0
  %79 = vmatpush1.msra.mxu0 0.0
  %80 = vmatprep.subr.mxu0 0.0
  %81 = vmatpush1.msra.mxu0 0.0
  %82 = vmatprep.subr.mxu0 0.0
  %83 = vmatpush1.msra.mxu0 0.0
  %84 = vmatprep.subr.mxu0 0.0
  %85 = vmatpush1.msra.mxu0 0.0
  %86 = vmatprep.subr.mxu0 0.0
  %87 = vmatpush1.msra.mxu0 0.0
  %88 = vmatprep.subr.mxu0 0.0
  %89 = vmatpush1.msra.mxu0 0.0
  %90 = vmatprep.subr.mxu0 0.0
  %91 = vmatpush1.msra.mxu0 0.0
  %92 = vmatprep.subr.mxu0 0.0
  %93 = vmatpush1.msra.mxu0 0.0
  %94 = vmatprep.subr.mxu0 0.0
  %95 = vmatpush1.msra.mxu0 0.0
  %96 = vmatprep.subr.mxu0 0.0
  %97 = vmatpush1.msra.mxu0 0.0
  %98 = vmatprep.subr.mxu0 0.0
  %99 = vmatpush1.msra.mxu0 0.0
  %100 = vmatprep.mubr.f32.mxu0 0.0
  %101 = vmatmul.mubr.f32.gmra.mrb[0].mxu0 %v14
  %v102 = vpop.f32.mrb[0].mxu0
  %v103 = vadd.f32 %v35, %v102
  %v104 = vpop.f32.mrb[0].mxu0
  %105 = vdwg.mxu0
  %v106 = vmax.f32 %v103, 0.0
  %v107 = vld [vmem:[%s1 + $0x8] sm:$0xff]
  %v108 = vld [vmem:[%s1 + $0x48] sm:$0xff]
  %v109 = vld [vmem:[%s1 + $0x88] sm:$0xff]
  %v110 = vld [vmem:[%s1 + $0xc8] sm:$0xff]
  %v111 = vld [vmem:[%s1 + $0x108] sm:$0xff]
  %v112 = vld [vmem:[%s1 + $0x148] sm:$0xff]
  %v113 = vld [vmem:[%s1 + $0x188] sm:$0xff]
  %v114 = vld [vmem:[%s1 + $0x1c8] sm:$0xff]
  %v115 = vld [vmem:[%s1 + $0x208] sm:$0xff]
  %v116 = vld [vmem:[%s1 + $0x248] sm:$0xff]
  %v117 = vld [vmem:[%s1 + $0x288] sm:$0xff]
  %v118 = vld [vmem:[%s1 + $0x2c8] sm:$0xff]
  %v119 = vld [vmem:[%s1 + $0x308] sm:$0xff]
  %v120 = vld [vmem:[%s1 + $0x348] sm:$0xff]
  %v121 = vld [vmem:[%s1 + $0x388] sm:$0xff]
  %v122 = vld [vmem:[%s1 + $0x3c8] sm:$0xff]
  %v123 = vld [vmem:[%s2 + $0x1] sm:$0x1]
  %v124 = vlaneseq
  %v125 = vshrl.u32 %v124, 7
  %v126 = vsub.s32 0, %v125
  %v127 = vrot.slane %v123, %v126
  %128 = vmatprep.subr.mxu0 0.0
  %129 = vmatpush1.msra.mxu0 %v107
  %130 = vmatprep.subr.mxu0 0.0
  %131 = vmatpush1.msra.mxu0 %v108
  %132 = vmatprep.subr.mxu0 0.0
  %133 = vmatpush1.msra.mxu0 %v109
  %134 = vmatprep.subr.mxu0 0.0
  %135 = vmatpush1.msra.mxu0 %v110
  %136 = vmatprep.subr.mxu0 0.0
  %137 = vmatpush1.msra.mxu0 %v111
  %138 = vmatprep.subr.mxu0 0.0
  %139 = vmatpush1.msra.mxu0 %v112
  %140 = vmatprep.subr.mxu0 0.0
  %141 = vmatpush1.msra.mxu0 %v113
  %142 = vmatprep.subr.mxu0 0.0
  %143 = vmatpush1.msra.mxu0 %v114
  %144 = vmatprep.subr.mxu0 0.0
  %145 = vmatpush1.msra.mxu0 %v115
  %146 = vmatprep.subr.mxu0 0.0
  %147 = vmatpush1.msra.mxu0 %v116
  %148 = vmatprep.subr.mxu0 0.0
  %149 = vmatpush1.msra.mxu0 %v117
  %150 = vmatprep.subr.mxu0 0.0
  %151 = vmatpush1.msra.mxu0 %v118
  %152 = vmatprep.subr.mxu0 0.0
  %153 = vmatpush1.msra.mxu0 %v119
  %154 = vmatprep.subr.mxu0 0.0
  %155 = vmatpush1.msra.mxu0 %v120
  %156 = vmatprep.subr.mxu0 0.0
  %157 = vmatpush1.msra.mxu0 %v121
  %158 = vmatprep.subr.mxu0 0.0
  %159 = vmatpush1.msra.mxu0 %v122
  %160 = vmatprep.subr.mxu0 0.0
  %161 = vmatpush1.msra.mxu0 0.0
  %162 = vmatprep.subr.mxu0 0.0
  %163 = vmatpush1.msra.mxu0 0.0
  %164 = vmatprep.subr.mxu0 0.0
  %165 = vmatpush1.msra.mxu0 0.0
  %166 = vmatprep.subr.mxu0 0.0
  %167 = vmatpush1.msra.mxu0 0.0
  %168 = vmatprep.subr.mxu0 0.0
  %169 = vmatpush1.msra.mxu0 0.0
  %170 = vmatprep.subr.mxu0 0.0
  %171 = vmatpush1.msra.mxu0 0.0
  %172 = vmatprep.subr.mxu0 0.0
  %173 = vmatpush1.msra.mxu0 0.0
  %174 = vmatprep.subr.mxu0 0.0
  %175 = vmatpush1.msra.mxu0 0.0
  %176 = vmatprep.subr.mxu0 0.0
  %177 = vmatpush1.msra.mxu0 0.0
  %178 = vmatprep.subr.mxu0 0.0
  %179 = vmatpush1.msra.mxu0 0.0
  %180 = vmatprep.subr.mxu0 0.0
  %181 = vmatpush1.msra.mxu0 0.0
  %182 = vmatprep.subr.mxu0 0.0
  %183 = vmatpush1.msra.mxu0 0.0
  %184 = vmatprep.subr.mxu0 0.0
  %185 = vmatpush1.msra.mxu0 0.0
  %186 = vmatprep.subr.mxu0 0.0
  %187 = vmatpush1.msra.mxu0 0.0
  %188 = vmatprep.subr.mxu0 0.0
  %189 = vmatpush1.msra.mxu0 0.0
  %190 = vmatprep.subr.mxu0 0.0
  %191 = vmatpush1.msra.mxu0 0.0
  %192 = vmatprep.mubr.f32.mxu0 0.0
  %193 = vmatmul.mubr.f32.gmra.mrb[0].mxu0 %v106
  %v194 = vpop.f32.mrb[0].mxu0
  %v195 = vadd.f32 %v127, %v194
  %v196 = vpop.f32.mrb[0].mxu0
  %197 = vdwg.mxu0
  %v198 = vmax.f32 %v195, 0.0
  %v199 = vld [vmem:[%s1 + $0x10] sm:$0xff]
  %v200 = vld [vmem:[%s1 + $0x50] sm:$0xff]
  %v201 = vld [vmem:[%s1 + $0x90] sm:$0xff]
  %v202 = vld [vmem:[%s1 + $0xd0] sm:$0xff]
  %v203 = vld [vmem:[%s1 + $0x110] sm:$0xff]
  %v204 = vld [vmem:[%s1 + $0x150] sm:$0xff]
  %v205 = vld [vmem:[%s1 + $0x190] sm:$0xff]
  %v206 = vld [vmem:[%s1 + $0x1d0] sm:$0xff]
  %v207 = vld [vmem:[%s1 + $0x210] sm:$0xff]
  %v208 = vld [vmem:[%s1 + $0x250] sm:$0xff]
  %v209 = vld [vmem:[%s1 + $0x290] sm:$0xff]
  %v210 = vld [vmem:[%s1 + $0x2d0] sm:$0xff]
  %v211 = vld [vmem:[%s1 + $0x310] sm:$0xff]
  %v212 = vld [vmem:[%s1 + $0x350] sm:$0xff]
  %v213 = vld [vmem:[%s1 + $0x390] sm:$0xff]
  %v214 = vld [vmem:[%s1 + $0x3d0] sm:$0xff]
  %v215 = vld [vmem:[%s2 + $0x2] sm:$0x1]
  %v216 = vlaneseq
  %v217 = vshrl.u32 %v216, 7
  %v218 = vsub.s32 0, %v217
  %v219 = vrot.slane %v215, %v218
  %220 = vmatprep.subr.mxu0 0.0
  %221 = vmatpush1.msra.mxu0 %v199
  %222 = vmatprep.subr.mxu0 0.0
  %223 = vmatpush1.msra.mxu0 %v200
  %224 = vmatprep.subr.mxu0 0.0
  %225 = vmatpush1.msra.mxu0 %v201
  %226 = vmatprep.subr.mxu0 0.0
  %227 = vmatpush1.msra.mxu0 %v202
  %228 = vmatprep.subr.mxu0 0.0
  %229 = vmatpush1.msra.mxu0 %v203
  %230 = vmatprep.subr.mxu0 0.0
  %231 = vmatpush1.msra.mxu0 %v204
  %232 = vmatprep.subr.mxu0 0.0
  %233 = vmatpush1.msra.mxu0 %v205
  %234 = vmatprep.subr.mxu0 0.0
  %235 = vmatpush1.msra.mxu0 %v206
  %236 = vmatprep.subr.mxu0 0.0
  %237 = vmatpush1.msra.mxu0 %v207
  %238 = vmatprep.subr.mxu0 0.0
  %239 = vmatpush1.msra.mxu0 %v208
  %240 = vmatprep.subr.mxu0 0.0
  %241 = vmatpush1.msra.mxu0 %v209
  %242 = vmatprep.subr.mxu0 0.0
  %243 = vmatpush1.msra.mxu0 %v210
  %244 = vmatprep.subr.mxu0 0.0
  %245 = vmatpush1.msra.mxu0 %v211
  %246 = vmatprep.subr.mxu0 0.0
  %247 = vmatpush1.msra.mxu0 %v212
  %248 = vmatprep.subr.mxu0 0.0
  %249 = vmatpush1.msra.mxu0 %v213
  %250 = vmatprep.subr.mxu0 0.0
  %251 = vmatpush1.msra.mxu0 %v214
  %252 = vmatprep.subr.mxu0 0.0
  %253 = vmatpush1.msra.mxu0 0.0
  %254 = vmatprep.subr.mxu0 0.0
  %255 = vmatpush1.msra.mxu0 0.0
  %256 = vmatprep.subr.mxu0 0.0
  %257 = vmatpush1.msra.mxu0 0.0
  %258 = vmatprep.subr.mxu0 0.0
  %259 = vmatpush1.msra.mxu0 0.0
  %260 = vmatprep.subr.mxu0 0.0
  %261 = vmatpush1.msra.mxu0 0.0
  %262 = vmatprep.subr.mxu0 0.0
  %263 = vmatpush1.msra.mxu0 0.0
  %264 = vmatprep.subr.mxu0 0.0
  %265 = vmatpush1.msra.mxu0 0.0
  %266 = vmatprep.subr.mxu0 0.0
  %267 = vmatpush1.msra.mxu0 0.0
  %268 = vmatprep.subr.mxu0 0.0
  %269 = vmatpush1.msra.mxu0 0.0
  %270 = vmatprep.subr.mxu0 0.0
  %271 = vmatpush1.msra.mxu0 0.0
  %272 = vmatprep.subr.mxu0 0.0
  %273 = vmatpush1.msra.mxu0 0.0
  %274 = vmatprep.subr.mxu0 0.0
  %275 = vmatpush1.msra.mxu0 0.0
  %276 = vmatprep.subr.mxu0 0.0
  %277 = vmatpush1.msra.mxu0 0.0
  %278 = vmatprep.subr.mxu0 0.0
  %279 = vmatpush1.msra.mxu0 0.0
  %280 = vmatprep.subr.mxu0 0.0
  %281 = vmatpush1.msra.mxu0 0.0
  %282 = vmatprep.subr.mxu0 0.0
  %283 = vmatpush1.msra.mxu0 0.0
  %284 = vmatprep.mubr.f32.mxu0 0.0
  %285 = vmatmul.mubr.f32.gmra.mrb[0].mxu0 %v198
  %v286 = vpop.f32.mrb[0].mxu0
  %v287 = vadd.f32 %v219, %v286
  %v288 = vpop.f32.mrb[0].mxu0
  %289 = vdwg.mxu0
  %v290 = vmax.f32 %v287, 0.0
  %v291 = vld [vmem:[%s1 + $0x18] sm:$0xff]
  %v292 = vld [vmem:[%s1 + $0x58] sm:$0xff]
  %v293 = vld [vmem:[%s1 + $0x98] sm:$0xff]
  %v294 = vld [vmem:[%s1 + $0xd8] sm:$0xff]
  %v295 = vld [vmem:[%s1 + $0x118] sm:$0xff]
  %v296 = vld [vmem:[%s1 + $0x158] sm:$0xff]
  %v297 = vld [vmem:[%s1 + $0x198] sm:$0xff]
  %v298 = vld [vmem:[%s1 + $0x1d8] sm:$0xff]
  %v299 = vld [vmem:[%s1 + $0x218] sm:$0xff]
  %v300 = vld [vmem:[%s1 + $0x258] sm:$0xff]
  %v301 = vld [vmem:[%s1 + $0x298] sm:$0xff]
  %v302 = vld [vmem:[%s1 + $0x2d8] sm:$0xff]
  %v303 = vld [vmem:[%s1 + $0x318] sm:$0xff]
  %v304 = vld [vmem:[%s1 + $0x358] sm:$0xff]
  %v305 = vld [vmem:[%s1 + $0x398] sm:$0xff]
  %v306 = vld [vmem:[%s1 + $0x3d8] sm:$0xff]
  %v307 = vld [vmem:[%s2 + $0x3] sm:$0x1]
  %v308 = vlaneseq
  %v309 = vshrl.u32 %v308, 7
  %v310 = vsub.s32 0, %v309
  %v311 = vrot.slane %v307, %v310
  %312 = vmatprep.subr.mxu0 0.0
  %313 = vmatpush1.msra.mxu0 %v291
  %314 = vmatprep.subr.mxu0 0.0
  %315 = vmatpush1.msra.mxu0 %v292
  %316 = vmatprep.subr.mxu0 0.0
  %317 = vmatpush1.msra.mxu0 %v293
  %318 = vmatprep.subr.mxu0 0.0
  %319 = vmatpush1.msra.mxu0 %v294
  %320 = vmatprep.subr.mxu0 0.0
  %321 = vmatpush1.msra.mxu0 %v295
  %322 = vmatprep.subr.mxu0 0.0
  %323 = vmatpush1.msra.mxu0 %v296
  %324 = vmatprep.subr.mxu0 0.0
  %325 = vmatpush1.msra.mxu0 %v297
  %326 = vmatprep.subr.mxu0 0.0
  %327 = vmatpush1.msra.mxu0 %v298
  %328 = vmatprep.subr.mxu0 0.0
  %329 = vmatpush1.msra.mxu0 %v299
  %330 = vmatprep.subr.mxu0 0.0
  %331 = vmatpush1.msra.mxu0 %v300
  %332 = vmatprep.subr.mxu0 0.0
  %333 = vmatpush1.msra.mxu0 %v301
  %334 = vmatprep.subr.mxu0 0.0
  %335 = vmatpush1.msra.mxu0 %v302
  %336 = vmatprep.subr.mxu0 0.0
  %337 = vmatpush1.msra.mxu0 %v303
  %338 = vmatprep.subr.mxu0 0.0
  %339 = vmatpush1.msra.mxu0 %v304
  %340 = vmatprep.subr.mxu0 0.0
  %341 = vmatpush1.msra.mxu0 %v305
  %342 = vmatprep.subr.mxu0 0.0
  %343 = vmatpush1.msra.mxu0 %v306
  %344 = vmatprep.subr.mxu0 0.0
  %345 = vmatpush1.msra.mxu0 0.0
  %346 = vmatprep.subr.mxu0 0.0
  %347 = vmatpush1.msra.mxu0 0.0
  %348 = vmatprep.subr.mxu0 0.0
  %349 = vmatpush1.msra.mxu0 0.0
  %350 = vmatprep.subr.mxu0 0.0
  %351 = vmatpush1.msra.mxu0 0.0
  %352 = vmatprep.subr.mxu0 0.0
  %353 = vmatpush1.msra.mxu0 0.0
  %354 = vmatprep.subr.mxu0 0.0
  %355 = vmatpush1.msra.mxu0 0.0
  %356 = vmatprep.subr.mxu0 0.0
  %357 = vmatpush1.msra.mxu0 0.0
  %358 = vmatprep.subr.mxu0 0.0
  %359 = vmatpush1.msra.mxu0 0.0
  %360 = vmatprep.subr.mxu0 0.0
  %361 = vmatpush1.msra.mxu0 0.0
  %362 = vmatprep.subr.mxu0 0.0
  %363 = vmatpush1.msra.mxu0 0.0
  %364 = vmatprep.subr.mxu0 0.0
  %365 = vmatpush1.msra.mxu0 0.0
  %366 = vmatprep.subr.mxu0 0.0
  %367 = vmatpush1.msra.mxu0 0.0
  %368 = vmatprep.subr.mxu0 0.0
  %369 = vmatpush1.msra.mxu0 0.0
  %370 = vmatprep.subr.mxu0 0.0
  %371 = vmatpush1.msra.mxu0 0.0
  %372 = vmatprep.subr.mxu0 0.0
  %373 = vmatpush1.msra.mxu0 0.0
  %374 = vmatprep.subr.mxu0 0.0
  %375 = vmatpush1.msra.mxu0 0.0
  %376 = vmatprep.mubr.f32.mxu0 0.0
  %377 = vmatmul.mubr.f32.gmra.mrb[0].mxu0 %v290
  %v378 = vpop.f32.mrb[0].mxu0
  %v379 = vadd.f32 %v311, %v378
  %v380 = vpop.f32.mrb[0].mxu0
  %381 = vdwg.mxu0
  %v382 = vld [vmem:[%s1 + $0x20] sm:$0xff]
  %v383 = vld [vmem:[%s1 + $0x60] sm:$0xff]
  %v384 = vld [vmem:[%s1 + $0xa0] sm:$0xff]
  %v385 = vld [vmem:[%s1 + $0xe0] sm:$0xff]
  %v386 = vld [vmem:[%s1 + $0x120] sm:$0xff]
  %v387 = vld [vmem:[%s1 + $0x160] sm:$0xff]
  %v388 = vld [vmem:[%s1 + $0x1a0] sm:$0xff]
  %v389 = vld [vmem:[%s1 + $0x1e0] sm:$0xff]
  %v390 = vld [vmem:[%s1 + $0x220] sm:$0xff]
  %v391 = vld [vmem:[%s1 + $0x260] sm:$0xff]
  %v392 = vld [vmem:[%s1 + $0x2a0] sm:$0xff]
  %v393 = vld [vmem:[%s1 + $0x2e0] sm:$0xff]
  %v394 = vld [vmem:[%s1 + $0x320] sm:$0xff]
  %v395 = vld [vmem:[%s1 + $0x360] sm:$0xff]
  %v396 = vld [vmem:[%s1 + $0x3a0] sm:$0xff]
  %v397 = vld [vmem:[%s1 + $0x3e0] sm:$0xff]
  %v398 = vld [vmem:[%s2 + $0x4] sm:$0x1]
  %v399 = vlaneseq
  %v400 = vshrl.u32 %v399, 7
  %v401 = vsub.s32 0, %v400
  %v402 = vrot.slane %v398, %v401
  %403 = vmatprep.subr.mxu0 0.0
  %404 = vmatpush1.msra.mxu0 %v382
  %405 = vmatprep.subr.mxu0 0.0
  %406 = vmatpush1.msra.mxu0 %v383
  %407 = vmatprep.subr.mxu0 0.0
  %408 = vmatpush1.msra.mxu0 %v384
  %409 = vmatprep.subr.mxu0 0.0
  %410 = vmatpush1.msra.mxu0 %v385
  %411 = vmatprep.subr.mxu0 0.0
  %412 = vmatpush1.msra.mxu0 %v386
  %413 = vmatprep.subr.mxu0 0.0
  %414 = vmatpush1.msra.mxu0 %v387
  %415 = vmatprep.subr.mxu0 0.0
  %416 = vmatpush1.msra.mxu0 %v388
  %417 = vmatprep.subr.mxu0 0.0
  %418 = vmatpush1.msra.mxu0 %v389
  %419 = vmatprep.subr.mxu0 0.0
  %420 = vmatpush1.msra.mxu0 %v390
  %421 = vmatprep.subr.mxu0 0.0
  %422 = vmatpush1.msra.mxu0 %v391
  %423 = vmatprep.subr.mxu0 0.0
  %424 = vmatpush1.msra.mxu0 %v392
  %425 = vmatprep.subr.mxu0 0.0
  %426 = vmatpush1.msra.mxu0 %v393
  %427 = vmatprep.subr.mxu0 0.0
  %428 = vmatpush1.msra.mxu0 %v394
  %429 = vmatprep.subr.mxu0 0.0
  %430 = vmatpush1.msra.mxu0 %v395
  %431 = vmatprep.subr.mxu0 0.0
  %432 = vmatpush1.msra.mxu0 %v396
  %433 = vmatprep.subr.mxu0 0.0
  %434 = vmatpush1.msra.mxu0 %v397
  %435 = vmatprep.subr.mxu0 0.0
  %436 = vmatpush1.msra.mxu0 0.0
  %437 = vmatprep.subr.mxu0 0.0
  %438 = vmatpush1.msra.mxu0 0.0
  %439 = vmatprep.subr.mxu0 0.0
  %440 = vmatpush1.msra.mxu0 0.0
  %441 = vmatprep.subr.mxu0 0.0
  %442 = vmatpush1.msra.mxu0 0.0
  %443 = vmatprep.subr.mxu0 0.0
  %444 = vmatpush1.msra.mxu0 0.0
  %445 = vmatprep.subr.mxu0 0.0
  %446 = vmatpush1.msra.mxu0 0.0
  %447 = vmatprep.subr.mxu0 0.0
  %448 = vmatpush1.msra.mxu0 0.0
  %449 = vmatprep.subr.mxu0 0.0
  %450 = vmatpush1.msra.mxu0 0.0
  %451 = vmatprep.subr.mxu0 0.0
  %452 = vmatpush1.msra.mxu0 0.0
  %453 = vmatprep.subr.mxu0 0.0
  %454 = vmatpush1.msra.mxu0 0.0
  %455 = vmatprep.subr.mxu0 0.0
  %456 = vmatpush1.msra.mxu0 0.0
  %457 = vmatprep.subr.mxu0 0.0
  %458 = vmatpush1.msra.mxu0 0.0
  %459 = vmatprep.subr.mxu0 0.0
  %460 = vmatpush1.msra.mxu0 0.0
  %461 = vmatprep.subr.mxu0 0.0
  %462 = vmatpush1.msra.mxu0 0.0
  %463 = vmatprep.subr.mxu0 0.0
  %464 = vmatpush1.msra.mxu0 0.0
  %465 = vmatprep.subr.mxu0 0.0
  %466 = vmatpush1.msra.mxu0 0.0
  %467 = vmatprep.mubr.f32.mxu0 0.0
  %468 = vmatmul.mubr.f32.gmra.mrb[0].mxu0 %v379
  %v469 = vpop.f32.mrb[0].mxu0
  %v470 = vadd.f32 %v402, %v469
  %v471 = vpop.f32.mrb[0].mxu0
  %472 = vdwg.mxu0
  %v473 = vmax.f32 %v470, 0.0
  %v474 = vld [vmem:[%s1 + $0x28] sm:$0xff]
  %v475 = vld [vmem:[%s1 + $0x68] sm:$0xff]
  %v476 = vld [vmem:[%s1 + $0xa8] sm:$0xff]
  %v477 = vld [vmem:[%s1 + $0xe8] sm:$0xff]
  %v478 = vld [vmem:[%s1 + $0x128] sm:$0xff]
  %v479 = vld [vmem:[%s1 + $0x168] sm:$0xff]
  %v480 = vld [vmem:[%s1 + $0x1a8] sm:$0xff]
  %v481 = vld [vmem:[%s1 + $0x1e8] sm:$0xff]
  %v482 = vld [vmem:[%s1 + $0x228] sm:$0xff]
  %v483 = vld [vmem:[%s1 + $0x268] sm:$0xff]
  %v484 = vld [vmem:[%s1 + $0x2a8] sm:$0xff]
  %v485 = vld [vmem:[%s1 + $0x2e8] sm:$0xff]
  %v486 = vld [vmem:[%s1 + $0x328] sm:$0xff]
  %v487 = vld [vmem:[%s1 + $0x368] sm:$0xff]
  %v488 = vld [vmem:[%s1 + $0x3a8] sm:$0xff]
  %v489 = vld [vmem:[%s1 + $0x3e8] sm:$0xff]
  %v490 = vld [vmem:[%s2 + $0x5] sm:$0x1]
  %v491 = vlaneseq
  %v492 = vshrl.u32 %v491, 7
  %v493 = vsub.s32 0, %v492
  %v494 = vrot.slane %v490, %v493
  %495 = vmatprep.subr.mxu0 0.0
  %496 = vmatpush1.msra.mxu0 %v474
  %497 = vmatprep.subr.mxu0 0.0
  %498 = vmatpush1.msra.mxu0 %v475
  %499 = vmatprep.subr.mxu0 0.0
  %500 = vmatpush1.msra.mxu0 %v476
  %501 = vmatprep.subr.mxu0 0.0
  %502 = vmatpush1.msra.mxu0 %v477
  %503 = vmatprep.subr.mxu0 0.0
  %504 = vmatpush1.msra.mxu0 %v478
  %505 = vmatprep.subr.mxu0 0.0
  %506 = vmatpush1.msra.mxu0 %v479
  %507 = vmatprep.subr.mxu0 0.0
  %508 = vmatpush1.msra.mxu0 %v480
  %509 = vmatprep.subr.mxu0 0.0
  %510 = vmatpush1.msra.mxu0 %v481
  %511 = vmatprep.subr.mxu0 0.0
  %512 = vmatpush1.msra.mxu0 %v482
  %513 = vmatprep.subr.mxu0 0.0
  %514 = vmatpush1.msra.mxu0 %v483
  %515 = vmatprep.subr.mxu0 0.0
  %516 = vmatpush1.msra.mxu0 %v484
  %517 = vmatprep.subr.mxu0 0.0
  %518 = vmatpush1.msra.mxu0 %v485
  %519 = vmatprep.subr.mxu0 0.0
  %520 = vmatpush1.msra.mxu0 %v486
  %521 = vmatprep.subr.mxu0 0.0
  %522 = vmatpush1.msra.mxu0 %v487
  %523 = vmatprep.subr.mxu0 0.0
  %524 = vmatpush1.msra.mxu0 %v488
  %525 = vmatprep.subr.mxu0 0.0
  %526 = vmatpush1.msra.mxu0 %v489
  %527 = vmatprep.subr.mxu0 0.0
  %528 = vmatpush1.msra.mxu0 0.0
  %529 = vmatprep.subr.mxu0 0.0
  %530 = vmatpush1.msra.mxu0 0.0
  %531 = vmatprep.subr.mxu0 0.0
  %532 = vmatpush1.msra.mxu0 0.0
  %533 = vmatprep.subr.mxu0 0.0
  %534 = vmatpush1.msra.mxu0 0.0
  %535 = vmatprep.subr.mxu0 0.0
  %536 = vmatpush1.msra.mxu0 0.0
  %537 = vmatprep.subr.mxu0 0.0
  %538 = vmatpush1.msra.mxu0 0.0
  %539 = vmatprep.subr.mxu0 0.0
  %540 = vmatpush1.msra.mxu0 0.0
  %541 = vmatprep.subr.mxu0 0.0
  %542 = vmatpush1.msra.mxu0 0.0
  %543 = vmatprep.subr.mxu0 0.0
  %544 = vmatpush1.msra.mxu0 0.0
  %545 = vmatprep.subr.mxu0 0.0
  %546 = vmatpush1.msra.mxu0 0.0
  %547 = vmatprep.subr.mxu0 0.0
  %548 = vmatpush1.msra.mxu0 0.0
  %549 = vmatprep.subr.mxu0 0.0
  %550 = vmatpush1.msra.mxu0 0.0
  %551 = vmatprep.subr.mxu0 0.0
  %552 = vmatpush1.msra.mxu0 0.0
  %553 = vmatprep.subr.mxu0 0.0
  %554 = vmatpush1.msra.mxu0 0.0
  %555 = vmatprep.subr.mxu0 0.0
  %556 = vmatpush1.msra.mxu0 0.0
  %557 = vmatprep.subr.mxu0 0.0
  %558 = vmatpush1.msra.mxu0 0.0
  %559 = vmatprep.mubr.f32.mxu0 0.0
  %560 = vmatmul.mubr.f32.gmra.mrb[0].mxu0 %v473
  %v561 = vpop.f32.mrb[0].mxu0
  %v562 = vadd.f32 %v494, %v561
  %v563 = vpop.f32.mrb[0].mxu0
  %564 = vdwg.mxu0
  %v565 = vmax.f32 %v562, 0.0
  %v566 = vld [vmem:[%s1 + $0x30] sm:$0xff]
  %v567 = vld [vmem:[%s1 + $0x70] sm:$0xff]
  %v568 = vld [vmem:[%s1 + $0xb0] sm:$0xff]
  %v569 = vld [vmem:[%s1 + $0xf0] sm:$0xff]
  %v570 = vld [vmem:[%s1 + $0x130] sm:$0xff]
  %v571 = vld [vmem:[%s1 + $0x170] sm:$0xff]
  %v572 = vld [vmem:[%s1 + $0x1b0] sm:$0xff]
  %v573 = vld [vmem:[%s1 + $0x1f0] sm:$0xff]
  %v574 = vld [vmem:[%s1 + $0x230] sm:$0xff]
  %v575 = vld [vmem:[%s1 + $0x270] sm:$0xff]
  %v576 = vld [vmem:[%s1 + $0x2b0] sm:$0xff]
  %v577 = vld [vmem:[%s1 + $0x2f0] sm:$0xff]
  %v578 = vld [vmem:[%s1 + $0x330] sm:$0xff]
  %v579 = vld [vmem:[%s1 + $0x370] sm:$0xff]
  %v580 = vld [vmem:[%s1 + $0x3b0] sm:$0xff]
  %v581 = vld [vmem:[%s1 + $0x3f0] sm:$0xff]
  %v582 = vld [vmem:[%s2 + $0x6] sm:$0x1]
  %v583 = vlaneseq
  %v584 = vshrl.u32 %v583, 7
  %v585 = vsub.s32 0, %v584
  %v586 = vrot.slane %v582, %v585
  %587 = vmatprep.subr.mxu0 0.0
  %588 = vmatpush1.msra.mxu0 %v566
  %589 = vmatprep.subr.mxu0 0.0
  %590 = vmatpush1.msra.mxu0 %v567
  %591 = vmatprep.subr.mxu0 0.0
  %592 = vmatpush1.msra.mxu0 %v568
  %593 = vmatprep.subr.mxu0 0.0
  %594 = vmatpush1.msra.mxu0 %v569
  %595 = vmatprep.subr.mxu0 0.0
  %596 = vmatpush1.msra.mxu0 %v570
  %597 = vmatprep.subr.mxu0 0.0
  %598 = vmatpush1.msra.mxu0 %v571
  %599 = vmatprep.subr.mxu0 0.0
  %600 = vmatpush1.msra.mxu0 %v572
  %601 = vmatprep.subr.mxu0 0.0
  %602 = vmatpush1.msra.mxu0 %v573
  %603 = vmatprep.subr.mxu0 0.0
  %604 = vmatpush1.msra.mxu0 %v574
  %605 = vmatprep.subr.mxu0 0.0
  %606 = vmatpush1.msra.mxu0 %v575
  %607 = vmatprep.subr.mxu0 0.0
  %608 = vmatpush1.msra.mxu0 %v576
  %609 = vmatprep.subr.mxu0 0.0
  %610 = vmatpush1.msra.mxu0 %v577
  %611 = vmatprep.subr.mxu0 0.0
  %612 = vmatpush1.msra.mxu0 %v578
  %613 = vmatprep.subr.mxu0 0.0
  %614 = vmatpush1.msra.mxu0 %v579
  %615 = vmatprep.subr.mxu0 0.0
  %616 = vmatpush1.msra.mxu0 %v580
  %617 = vmatprep.subr.mxu0 0.0
  %618 = vmatpush1.msra.mxu0 %v581
  %619 = vmatprep.subr.mxu0 0.0
  %620 = vmatpush1.msra.mxu0 0.0
  %621 = vmatprep.subr.mxu0 0.0
  %622 = vmatpush1.msra.mxu0 0.0
  %623 = vmatprep.subr.mxu0 0.0
  %624 = vmatpush1.msra.mxu0 0.0
  %625 = vmatprep.subr.mxu0 0.0
  %626 = vmatpush1.msra.mxu0 0.0
  %627 = vmatprep.subr.mxu0 0.0
  %628 = vmatpush1.msra.mxu0 0.0
  %629 = vmatprep.subr.mxu0 0.0
  %630 = vmatpush1.msra.mxu0 0.0
  %631 = vmatprep.subr.mxu0 0.0
  %632 = vmatpush1.msra.mxu0 0.0
  %633 = vmatprep.subr.mxu0 0.0
  %634 = vmatpush1.msra.mxu0 0.0
  %635 = vmatprep.subr.mxu0 0.0
  %636 = vmatpush1.msra.mxu0 0.0
  %637 = vmatprep.subr.mxu0 0.0
  %638 = vmatpush1.msra.mxu0 0.0
  %639 = vmatprep.subr.mxu0 0.0
  %640 = vmatpush1.msra.mxu0 0.0
  %641 = vmatprep.subr.mxu0 0.0
  %642 = vmatpush1.msra.mxu0 0.0
  %643 = vmatprep.subr.mxu0 0.0
  %644 = vmatpush1.msra.mxu0 0.0
  %645 = vmatprep.subr.mxu0 0.0
  %646 = vmatpush1.msra.mxu0 0.0
  %647 = vmatprep.subr.mxu0 0.0
  %648 = vmatpush1.msra.mxu0 0.0
  %649 = vmatprep.subr.mxu0 0.0
  %650 = vmatpush1.msra.mxu0 0.0
  %651 = vmatprep.mubr.f32.mxu0 0.0
  %652 = vmatmul.mubr.f32.gmra.mrb[0].mxu0 %v565
  %v653 = vpop.f32.mrb[0].mxu0
  %v654 = vadd.f32 %v586, %v653
  %v655 = vpop.f32.mrb[0].mxu0
  %656 = vdwg.mxu0
  %v657 = vmax.f32 %v654, 0.0
  %v658 = vld [vmem:[%s1 + $0x38] sm:$0xff]
  %v659 = vld [vmem:[%s1 + $0x78] sm:$0xff]
  %v660 = vld [vmem:[%s1 + $0xb8] sm:$0xff]
  %v661 = vld [vmem:[%s1 + $0xf8] sm:$0xff]
  %v662 = vld [vmem:[%s1 + $0x138] sm:$0xff]
  %v663 = vld [vmem:[%s1 + $0x178] sm:$0xff]
  %v664 = vld [vmem:[%s1 + $0x1b8] sm:$0xff]
  %v665 = vld [vmem:[%s1 + $0x1f8] sm:$0xff]
  %v666 = vld [vmem:[%s1 + $0x238] sm:$0xff]
  %v667 = vld [vmem:[%s1 + $0x278] sm:$0xff]
  %v668 = vld [vmem:[%s1 + $0x2b8] sm:$0xff]
  %v669 = vld [vmem:[%s1 + $0x2f8] sm:$0xff]
  %v670 = vld [vmem:[%s1 + $0x338] sm:$0xff]
  %v671 = vld [vmem:[%s1 + $0x378] sm:$0xff]
  %v672 = vld [vmem:[%s1 + $0x3b8] sm:$0xff]
  %v673 = vld [vmem:[%s1 + $0x3f8] sm:$0xff]
  %v674 = vld [vmem:[%s2 + $0x7] sm:$0x1]
  %v675 = vlaneseq
  %v676 = vshrl.u32 %v675, 7
  %v677 = vsub.s32 0, %v676
  %v678 = vrot.slane %v674, %v677
  %679 = vmatprep.subr.mxu0 0.0
  %680 = vmatpush1.msra.mxu0 %v658
  %681 = vmatprep.subr.mxu0 0.0
  %682 = vmatpush1.msra.mxu0 %v659
  %683 = vmatprep.subr.mxu0 0.0
  %684 = vmatpush1.msra.mxu0 %v660
  %685 = vmatprep.subr.mxu0 0.0
  %686 = vmatpush1.msra.mxu0 %v661
  %687 = vmatprep.subr.mxu0 0.0
  %688 = vmatpush1.msra.mxu0 %v662
  %689 = vmatprep.subr.mxu0 0.0
  %690 = vmatpush1.msra.mxu0 %v663
  %691 = vmatprep.subr.mxu0 0.0
  %692 = vmatpush1.msra.mxu0 %v664
  %693 = vmatprep.subr.mxu0 0.0
  %694 = vmatpush1.msra.mxu0 %v665
  %695 = vmatprep.subr.mxu0 0.0
  %696 = vmatpush1.msra.mxu0 %v666
  %697 = vmatprep.subr.mxu0 0.0
  %698 = vmatpush1.msra.mxu0 %v667
  %699 = vmatprep.subr.mxu0 0.0
  %700 = vmatpush1.msra.mxu0 %v668
  %701 = vmatprep.subr.mxu0 0.0
  %702 = vmatpush1.msra.mxu0 %v669
  %703 = vmatprep.subr.mxu0 0.0
  %704 = vmatpush1.msra.mxu0 %v670
  %705 = vmatprep.subr.mxu0 0.0
  %706 = vmatpush1.msra.mxu0 %v671
  %707 = vmatprep.subr.mxu0 0.0
  %708 = vmatpush1.msra.mxu0 %v672
  %709 = vmatprep.subr.mxu0 0.0
  %710 = vmatpush1.msra.mxu0 %v673
  %711 = vmatprep.subr.mxu0 0.0
  %712 = vmatpush1.msra.mxu0 0.0
  %713 = vmatprep.subr.mxu0 0.0
  %714 = vmatpush1.msra.mxu0 0.0
  %715 = vmatprep.subr.mxu0 0.0
  %716 = vmatpush1.msra.mxu0 0.0
  %717 = vmatprep.subr.mxu0 0.0
  %718 = vmatpush1.msra.mxu0 0.0
  %719 = vmatprep.subr.mxu0 0.0
  %720 = vmatpush1.msra.mxu0 0.0
  %721 = vmatprep.subr.mxu0 0.0
  %722 = vmatpush1.msra.mxu0 0.0
  %723 = vmatprep.subr.mxu0 0.0
  %724 = vmatpush1.msra.mxu0 0.0
  %725 = vmatprep.subr.mxu0 0.0
  %726 = vmatpush1.msra.mxu0 0.0
  %727 = vmatprep.subr.mxu0 0.0
  %728 = vmatpush1.msra.mxu0 0.0
  %729 = vmatprep.subr.mxu0 0.0
  %730 = vmatpush1.msra.mxu0 0.0
  %731 = vmatprep.subr.mxu0 0.0
  %732 = vmatpush1.msra.mxu0 0.0
  %733 = vmatprep.subr.mxu0 0.0
  %734 = vmatpush1.msra.mxu0 0.0
  %735 = vmatprep.subr.mxu0 0.0
  %736 = vmatpush1.msra.mxu0 0.0
  %737 = vmatprep.subr.mxu0 0.0
  %738 = vmatpush1.msra.mxu0 0.0
  %739 = vmatprep.subr.mxu0 0.0
  %740 = vmatpush1.msra.mxu0 0.0
  %741 = vmatprep.subr.mxu0 0.0
  %742 = vmatpush1.msra.mxu0 0.0
  %743 = vmatprep.mubr.f32.mxu0 0.0
  %744 = vmatmul.mubr.f32.gmra.mrb[0].mxu0 %v657
  %v745 = vpop.f32.mrb[0].mxu0
  %v746 = vadd.f32 %v678, %v745
  %v747 = vpop.f32.mrb[0].mxu0
  %748 = vdwg.mxu0
  %v749 = vadd.f32 %v379, %v746
  %750 = vst [vmem:[%s3] sm:$0xff] %v749
  // Predicated region
  $region14: #{deep_autoencoder_forward.1} parent=0 // pred_check
    _
  $region15: #{deep_autoencoder_forward.1} parent=0 // pred_check_branch
    %752 = sbr.rel (0) target = $region17
  $region16: #{deep_autoencoder_forward.1} parent=0 // pred_region
    _
  $region17: #{deep_autoencoder_forward.1} parent=0 // pred_fallthru
    _
  // Predicated region
  $region18: #{deep_autoencoder_forward.1} parent=0 // pred_check
    _
  $region19: #{deep_autoencoder_forward.1} parent=0 // pred_check_branch
    %754 = sbr.rel (0) target = $region21
  $region20: #{deep_autoencoder_forward.1} parent=0 // pred_region
    _
  $region21: #{deep_autoencoder_forward.1} parent=0 // pred_fallthru
    _

</llo_original>
